<compile_context>
chip_gen: v7x
topology: tpu7x:2x2x1
jax: 0.10.0
libtpu: 0.0.40
codegen_flags: <defaults>
</compile_context>

<pallas_src>
import jax
import jax.numpy as jnp
import numpy as np
from jax.experimental import pallas as pl
from jax.experimental.pallas import tpu as pltpu

LN_EPS = 1e-5  # nn.LayerNorm default


def _round_up(x, m):
    return ((x + m - 1) // m) * m


# ---------------------------------------------------------------------------
# Kernel: operates on the lane-packed layout.
#   x_ref   : [TR, 128]   8 logical rows of 16 features per packed row (streamed)
#   w*_ref  : block-diagonal kron(I8, W) weights in bf16 (resident in VMEM)
#   b*_ref  : tiled biases in f32 (LN affine already folded into w2/b2)
#   m_ref   : [256, 256]  kron(I8, ones(32,32)/32) segmented-mean matrix (bf16)
#   o_ref   : [TR, 128]   8 logical output rows of 16 features per packed row
# ---------------------------------------------------------------------------
def mlp_scorenet_kernel(
    x_ref,      # [TR, 128]
    w1_ref,     # [128, 256] bf16
    b1_ref,     # [1, 256]   f32
    a_ref,      # [1, 1]     f32   PReLU slope
    w2_ref,     # [256, 256] bf16  (LayerNorm affine folded in)
    b2_ref,     # [1, 256]   f32
    w3_ref,     # [256, 128] bf16
    b3_ref,     # [1, 128]   f32
    m_ref,      # [256, 256] bf16  segmented averaging matrix
    o_ref,      # [TR, 128]
):
    tr = x_ref.shape[0]

    # Linear(16, 32) as block-diagonal kron; bf16 operands, f32 accumulation.
    x = x_ref[...].astype(w1_ref.dtype)
    h = jnp.dot(x, w1_ref[...], preferred_element_type=jnp.float32) + b1_ref[...]

    # PReLU (single learnable slope; nn.PReLU default num_parameters=1).
    h = jnp.where(h > 0, h, a_ref[...] * h)

    # LayerNorm(32) stats, segmented per 32-lane group: ONE stacked bf16 matmul
    # against the block-diagonal 1/32 averaging matrix (entries exact in bf16),
    # f32 accumulation.  Rows [0, TR) -> mu, rows [TR, 2TR) -> E[h^2].
    hh = jnp.concatenate(
        [h.astype(m_ref.dtype), (h * h).astype(m_ref.dtype)], axis=0)
    stats = jnp.dot(hh, m_ref[...], preferred_element_type=jnp.float32)
    mu = stats[:tr]
    var = jnp.maximum(stats[tr:] - mu * mu, 0.0)   # one-pass variance
    z = (h - mu) * jax.lax.rsqrt(var + LN_EPS)     # affine folded into w2/b2

    # Linear(32, 32) (with LayerNorm gamma/beta folded in at pack time).
    h = jnp.dot(z.astype(w2_ref.dtype), w2_ref[...],
                preferred_element_type=jnp.float32) + b2_ref[...]

    # ELU (alpha = 1.0).
    h = jnp.where(h > 0, h, jnp.exp(h) - 1.0)

    # Dropout(0.1): eval mode -> identity.
    # TODO(synk): train-mode dropout via pltpu.prng_seed / prng_random_bits.

    # Linear(32, 16) + Tanh; lane-dense 128-wide store.
    h = jnp.dot(h.astype(w3_ref.dtype), w3_ref[...],
                preferred_element_type=jnp.float32) + b3_ref[...]
    o_ref[...] = jnp.tanh(h).astype(o_ref.dtype)


# ---------------------------------------------------------------------------
# One-time parameter packing (block-diagonal kron layout, bf16 MXU operands,
# LayerNorm affine folded into the second linear).
# ---------------------------------------------------------------------------
def pack_params(params, pack, *, weight_dtype=jnp.bfloat16):
    eye = jnp.eye(pack, dtype=jnp.float32)

    def bd(w):              # [in, out] -> [pack*in, pack*out], block diagonal
        return jnp.kron(eye, w.astype(jnp.float32))

    def tile_row(v):        # [1, d] -> [1, pack*d]
        return jnp.tile(v.reshape(1, -1).astype(jnp.float32), (1, pack))

    hidden = params["w1"].shape[1]

    # Fold LayerNorm affine into the second linear (exact in f32):
    #   y = z*g + b ; y@W2 + b2 == z@(diag(g)@W2) + (b@W2 + b2)
    w2_eff = params["ln_w"].reshape(-1, 1) * params["w2"]
    b2_eff = params["ln_b"].reshape(1, -1) @ params["w2"] + params["b2"].reshape(1, -1)

    # Segmented averaging matrix; 1/32 is exactly representable in bf16.
    mean_mat = jnp.kron(eye, jnp.full((hidden, hidden), 1.0 / hidden, jnp.float32))

    wd = weight_dtype
    return {
        "w1": bd(params["w1"]).astype(wd), "b1": tile_row(params["b1"]),
        "a": params["prelu_a"].reshape(1, 1).astype(jnp.float32),
        "w2": bd(w2_eff).astype(wd),       "b2": tile_row(b2_eff),
        "w3": bd(params["w3"]).astype(wd), "b3": tile_row(params["b3"]),
        "m": mean_mat.astype(wd),
    }


# ---------------------------------------------------------------------------
# Wrapper: packs x, launches the batch-tiled pallas_call, unpacks the output.
# ---------------------------------------------------------------------------
def mlp_scorenet_pallas(x, packed, *, tile_rows=2048, min_grid_steps=4,
                        io_dtype=jnp.float32,
                        vmem_limit_bytes=40 * 1024 * 1024):
    B, d_in = x.shape
    assert 128 % d_in == 0, "lane packing requires d_in to divide 128"
    pack = 128 // d_in
    lanes_in = pack * d_in                       # 128
    lanes_out = packed["w3"].shape[1]            # pack * d_out (= 128 here)
    d_out = lanes_out // pack

    # Packed-row geometry.  Big tiles amortize the ~0.35us/grid-step overhead;
    # the min_grid_steps floor keeps the DMA/compute pipeline (and v7x's two
    # TensorCores) busy for large batches.  Rounded to 16 rows so bf16 I/O
    # tiling stays legal.
    rows = pl.cdiv(B, pack)
    if rows <= tile_rows:
        tr = _round_up(rows, 16)
    else:
        tr = min(tile_rows, _round_up(pl.cdiv(rows, min_grid_steps), 16))
    rows_pad = _round_up(rows, tr)
    b_pad = rows_pad * pack

    x = x.astype(io_dtype)
    x_pad = x if b_pad == B else jnp.pad(x, ((0, b_pad - B), (0, 0)))
    x_packed = x_pad.reshape(rows_pad, lanes_in)   # free contiguous reshape

    grid = (rows_pad // tr,)

    def resident(arr):  # full-array block, constant index map -> DMA'd once
        # NOTE: pipeline_mode=pl.Buffered(1) would single-buffer these constant
        # weights and reclaim ~0.4 MiB VMEM; left at the default for safety.
        return pl.BlockSpec(arr.shape, lambda i: (0, 0))

    out_packed = pl.pallas_call(
        mlp_scorenet_kernel,
        out_shape=jax.ShapeDtypeStruct((rows_pad, lanes_out), io_dtype),
        grid=grid,
        in_specs=[
            pl.BlockSpec((tr, lanes_in), lambda i: (i, 0)),   # x (streamed)
            resident(packed["w1"]), resident(packed["b1"]),
            resident(packed["a"]),
            resident(packed["w2"]), resident(packed["b2"]),
            resident(packed["w3"]), resident(packed["b3"]),
            resident(packed["m"]),
        ],
        out_specs=pl.BlockSpec((tr, lanes_out), lambda i: (i, 0)),
        compiler_params=pltpu.CompilerParams(
            # "parallel" lets the runtime shard grid steps across v7x's 2 TCs.
            # TODO(synk): if a v7x profile shows one idle core, switch this axis
            #             to pltpu.CORE_PARALLEL.
            dimension_semantics=("parallel",),
            vmem_limit_bytes=vmem_limit_bytes,   # 40 MiB: v7x-safe; 48-64 MiB ok on v5e/v6e
        ),
    )(
        x_packed,
        packed["w1"], packed["b1"], packed["a"],
        packed["w2"], packed["b2"], packed["w3"], packed["b3"], packed["m"],
    )

    out = out_packed.reshape(b_pad, d_out)
    return out[:B] if b_pad != B else out


# ---------------------------------------------------------------------------
# Pure-JAX references mirroring the PyTorch forward (eval mode).
#   matmul_dtype=float32 : straight f32 reference (ground-truth semantics)
#   matmul_dtype=bfloat16: replicates the kernel's bf16-operand / f32-accum
#                          matmuls, one-pass LN stats and affine folding, for a
#                          tight logic check of the kernel itself.
# ---------------------------------------------------------------------------
def mlp_scorenet_ref(x, params, *, matmul_dtype=jnp.float32):
    def dot(a, b):
        return jnp.dot(a.astype(matmul_dtype), b.astype(matmul_dtype),
                       preferred_element_type=jnp.float32)

    h = dot(x, params["w1"]) + params["b1"]
    h = jnp.where(h > 0, h, params["prelu_a"] * h)

    if matmul_dtype == jnp.float32:
        mu = jnp.mean(h, axis=-1, keepdims=True)
        var = jnp.mean((h - mu) ** 2, axis=-1, keepdims=True)
        z = (h - mu) * jax.lax.rsqrt(var + LN_EPS)
        z = z * params["ln_w"] + params["ln_b"]
        h = dot(z, params["w2"]) + params["b2"]
    else:
        mu = jnp.mean(h.astype(matmul_dtype).astype(jnp.float32),
                      axis=-1, keepdims=True)
        msq = jnp.mean((h * h).astype(matmul_dtype).astype(jnp.float32),
                       axis=-1, keepdims=True)
        var = jnp.maximum(msq - mu * mu, 0.0)
        z = (h - mu) * jax.lax.rsqrt(var + LN_EPS)
        w2_eff = params["ln_w"].reshape(-1, 1) * params["w2"]
        b2_eff = params["ln_b"].reshape(1, -1) @ params["w2"] + params["b2"]
        h = dot(z, w2_eff) + b2_eff

    h = jnp.where(h > 0, h, jnp.exp(h) - 1.0)
    h = dot(h, params["w3"]) + params["b3"]
    return jnp.tanh(h)


def make_params(key, d_in=16, hidden=32, d_out=16):
    ks = jax.random.split(key, 8)
    s1 = 1.0 / np.sqrt(d_in)
    s2 = 1.0 / np.sqrt(hidden)
    # Weights stored pre-transposed as [in, out] (nn.Linear stores [out, in]).
    return {
        "w1": jax.random.uniform(ks[0], (d_in, hidden), jnp.float32, -s1, s1),
        "b1": jax.random.uniform(ks[1], (1, hidden), jnp.float32, -s1, s1),
        "prelu_a": jnp.array([0.25], dtype=jnp.float32),   # nn.PReLU default
        # Non-trivial LayerNorm affine so the pack-time folding is exercised.
        "ln_w": 1.0 + 0.1 * jax.random.normal(ks[2], (1, hidden), jnp.float32),
        "ln_b": 0.1 * jax.random.normal(ks[3], (1, hidden), jnp.float32),
        "w2": jax.random.uniform(ks[4], (hidden, hidden), jnp.float32, -s2, s2),
        "b2": jax.random.uniform(ks[5], (1, hidden), jnp.float32, -s2, s2),
        "w3": jax.random.uniform(ks[6], (hidden, d_out), jnp.float32, -s2, s2),
        "b3": jax.random.uniform(ks[7], (1, d_out), jnp.float32, -s2, s2),
    }


if __name__ == "__main__":
    key = jax.random.PRNGKey(0)
    k_x1, k_x2, k_p = jax.random.split(key, 3)

    D_IN, HIDDEN, D_OUT = 16, 32, 16
    PACK = 128 // D_IN

    params = make_params(k_p, D_IN, HIDDEN, D_OUT)
    packed = pack_params(params, PACK)

    # Case 1: small batch, single-tile path.
    B1 = 64
    x1 = jax.random.normal(k_x1, (B1, D_IN), dtype=jnp.float32)
    y1 = jax.block_until_ready(mlp_scorenet_pallas(x1, packed))
    y1_bf = jax.block_until_ready(mlp_scorenet_ref(x1, params, matmul_dtype=jnp.bfloat16))
    y1_f32 = jax.block_until_ready(mlp_scorenet_ref(x1, params))
    assert y1.shape == (B1, D_OUT)
    # Tight check of kernel logic vs the bf16-matched reference.
    assert np.allclose(np.asarray(y1), np.asarray(y1_bf), atol=2e-3, rtol=2e-3), \
        "Pallas output mismatch vs bf16-matched reference (B=64)"
    # Loose check vs the f32 reference (documents the bf16-operand tradeoff).
    assert np.allclose(np.asarray(y1), np.asarray(y1_f32), atol=3e-2), \
        "Pallas output mismatch vs f32 reference (B=64)"

    # Case 2: ragged batch exercising the multi-step pipelined grid (5 steps).
    B2 = 8200
    x2 = jax.random.normal(k_x2, (B2, D_IN), dtype=jnp.float32)
    y2 = jax.block_until_ready(mlp_scorenet_pallas(x2, packed, tile_rows=256))
    y2_bf = jax.block_until_ready(mlp_scorenet_ref(x2, params, matmul_dtype=jnp.bfloat16))
    assert y2.shape == (B2, D_OUT)
    assert np.allclose(np.asarray(y2), np.asarray(y2_bf), atol=2e-3, rtol=2e-3), \
        "Pallas output mismatch vs bf16-matched reference (B=8200)"

    # Case 3 (v5e-oriented opt-in): bf16 streaming of x / out, f32 accumulation.
    y3 = jax.block_until_ready(
        mlp_scorenet_pallas(x1, packed, io_dtype=jnp.bfloat16)).astype(jnp.float32)
    assert np.allclose(np.asarray(y3), np.asarray(y1_f32), atol=5e-2), \
        "Pallas output mismatch vs f32 reference (bf16 I/O path)"

    print("KERNEL_OK")
</pallas_src>

<mosaic_0001>
module attributes {stable_mosaic.version = 11 : i64} {
  func.func @mlp_scorenet_kernel(%arg0: i32, %arg1: memref<16x128xf32, #tpu.memory_space<vmem>>, %arg2: memref<128x256xbf16, #tpu.memory_space<vmem>>, %arg3: memref<1x256xf32, #tpu.memory_space<vmem>>, %arg4: memref<1x1xf32, #tpu.memory_space<vmem>>, %arg5: memref<256x256xbf16, #tpu.memory_space<vmem>>, %arg6: memref<1x256xf32, #tpu.memory_space<vmem>>, %arg7: memref<256x128xbf16, #tpu.memory_space<vmem>>, %arg8: memref<1x128xf32, #tpu.memory_space<vmem>>, %arg9: memref<256x256xbf16, #tpu.memory_space<vmem>>, %arg10: memref<16x128xf32, #tpu.memory_space<vmem>>) attributes {dimension_semantics = [#tpu.dimension_semantics<parallel>], iteration_bounds = array<i64: 1>, scalar_prefetch = 0 : i64, scratch_operands = 0 : i64, tpu.core_type = #tpu.core_type<tc>, window_params = [{transform_indices = @transform_0, window_bounds = array<i64: 16, 128>}, {pipeline_mode = #tpu.pipeline_mode<synchronous>, transform_indices = @transform_1, window_bounds = array<i64: 128, 256>}, {pipeline_mode = #tpu.pipeline_mode<synchronous>, transform_indices = @transform_2, window_bounds = array<i64: 1, 256>}, {pipeline_mode = #tpu.pipeline_mode<synchronous>, transform_indices = @transform_3, window_bounds = array<i64: 1, 1>}, {pipeline_mode = #tpu.pipeline_mode<synchronous>, transform_indices = @transform_4, window_bounds = array<i64: 256, 256>}, {pipeline_mode = #tpu.pipeline_mode<synchronous>, transform_indices = @transform_5, window_bounds = array<i64: 1, 256>}, {pipeline_mode = #tpu.pipeline_mode<synchronous>, transform_indices = @transform_6, window_bounds = array<i64: 256, 128>}, {pipeline_mode = #tpu.pipeline_mode<synchronous>, transform_indices = @transform_7, window_bounds = array<i64: 1, 128>}, {pipeline_mode = #tpu.pipeline_mode<synchronous>, transform_indices = @transform_8, window_bounds = array<i64: 256, 256>}, {transform_indices = @transform_9, window_bounds = array<i64: 16, 128>}]} {
    %c0 = arith.constant 0 : index
    %c0_0 = arith.constant 0 : index
    %0 = vector.load %arg1[%c0, %c0_0] : memref<16x128xf32, #tpu.memory_space<vmem>>, vector<16x128xf32>
    %1 = arith.truncf %0 : vector<16x128xf32> to vector<16x128xbf16>
    %c0_1 = arith.constant 0 : index
    %c0_2 = arith.constant 0 : index
    %2 = vector.load %arg2[%c0_1, %c0_2] : memref<128x256xbf16, #tpu.memory_space<vmem>>, vector<128x256xbf16>
    %cst = arith.constant dense<0.000000e+00> : vector<16x256xf32>
    %3 = tpu.matmul %1, %2, %cst {dimension_numbers = #tpu.dot_dimension_numbers<[1], [0], [0], [1], [0, 0, 1, 1], [], []>} : vector<16x128xbf16>, vector<128x256xbf16>, vector<16x256xf32> -> vector<16x256xf32>
    %c0_3 = arith.constant 0 : index
    %c0_4 = arith.constant 0 : index
    %4 = vector.load %arg3[%c0_3, %c0_4] : memref<1x256xf32, #tpu.memory_space<vmem>>, vector<1x256xf32>
    %5 = vector.broadcast %4 : vector<1x256xf32> to vector<16x256xf32>
    %6 = arith.addf %3, %5 : vector<16x256xf32>
    %cst_5 = arith.constant 0.000000e+00 : f32
    %7 = vector.broadcast %cst_5 : f32 to vector<16x256xf32>
    %8 = arith.cmpf ogt, %6, %7 : vector<16x256xf32>
    %c0_6 = arith.constant 0 : index
    %c0_7 = arith.constant 0 : index
    %9 = vector.load %arg4[%c0_6, %c0_7] : memref<1x1xf32, #tpu.memory_space<vmem>>, vector<1x1xf32>
    %10 = vector.broadcast %9 : vector<1x1xf32> to vector<16x256xf32>
    %11 = arith.mulf %10, %6 : vector<16x256xf32>
    %12 = arith.select %8, %6, %11 : vector<16x256xi1>, vector<16x256xf32>
    %13 = arith.truncf %12 : vector<16x256xf32> to vector<16x256xbf16>
    %14 = arith.mulf %12, %12 : vector<16x256xf32>
    %15 = arith.truncf %14 : vector<16x256xf32> to vector<16x256xbf16>
    %16 = tpu.concatenate %13, %15 in 0 : vector<16x256xbf16>, vector<16x256xbf16> -> vector<32x256xbf16>
    %c0_8 = arith.constant 0 : index
    %c0_9 = arith.constant 0 : index
    %17 = vector.load %arg9[%c0_8, %c0_9] : memref<256x256xbf16, #tpu.memory_space<vmem>>, vector<256x256xbf16>
    %cst_10 = arith.constant dense<0.000000e+00> : vector<32x256xf32>
    %18 = tpu.matmul %16, %17, %cst_10 {dimension_numbers = #tpu.dot_dimension_numbers<[1], [0], [0], [1], [0, 0, 1, 1], [], []>} : vector<32x256xbf16>, vector<256x256xbf16>, vector<32x256xf32> -> vector<32x256xf32>
    %19 = vector.extract_strided_slice %18 {offsets = [0, 0], sizes = [16, 256], strides = [1, 1]} : vector<32x256xf32> to vector<16x256xf32>
    %20 = vector.extract_strided_slice %18 {offsets = [16, 0], sizes = [16, 256], strides = [1, 1]} : vector<32x256xf32> to vector<16x256xf32>
    %21 = arith.mulf %19, %19 : vector<16x256xf32>
    %22 = arith.subf %20, %21 : vector<16x256xf32>
    %cst_11 = arith.constant 0.000000e+00 : f32
    %23 = vector.broadcast %cst_11 : f32 to vector<16x256xf32>
    %24 = arith.maximumf %22, %23 : vector<16x256xf32>
    %25 = arith.subf %12, %19 : vector<16x256xf32>
    %cst_12 = arith.constant 9.99999974E-6 : f32
    %26 = vector.broadcast %cst_12 : f32 to vector<16x256xf32>
    %27 = arith.addf %24, %26 : vector<16x256xf32>
    %28 = math.rsqrt %27 : vector<16x256xf32>
    %29 = arith.mulf %25, %28 : vector<16x256xf32>
    %30 = arith.truncf %29 : vector<16x256xf32> to vector<16x256xbf16>
    %c0_13 = arith.constant 0 : index
    %c0_14 = arith.constant 0 : index
    %31 = vector.load %arg5[%c0_13, %c0_14] : memref<256x256xbf16, #tpu.memory_space<vmem>>, vector<256x256xbf16>
    %cst_15 = arith.constant dense<0.000000e+00> : vector<16x256xf32>
    %32 = tpu.matmul %30, %31, %cst_15 {dimension_numbers = #tpu.dot_dimension_numbers<[1], [0], [0], [1], [0, 0, 1, 1], [], []>} : vector<16x256xbf16>, vector<256x256xbf16>, vector<16x256xf32> -> vector<16x256xf32>
    %c0_16 = arith.constant 0 : index
    %c0_17 = arith.constant 0 : index
    %33 = vector.load %arg6[%c0_16, %c0_17] : memref<1x256xf32, #tpu.memory_space<vmem>>, vector<1x256xf32>
    %34 = vector.broadcast %33 : vector<1x256xf32> to vector<16x256xf32>
    %35 = arith.addf %32, %34 : vector<16x256xf32>
    %cst_18 = arith.constant 0.000000e+00 : f32
    %36 = vector.broadcast %cst_18 : f32 to vector<16x256xf32>
    %37 = arith.cmpf ogt, %35, %36 : vector<16x256xf32>
    %38 = math.exp %35 : vector<16x256xf32>
    %cst_19 = arith.constant 1.000000e+00 : f32
    %39 = vector.broadcast %cst_19 : f32 to vector<16x256xf32>
    %40 = arith.subf %38, %39 : vector<16x256xf32>
    %41 = arith.select %37, %35, %40 : vector<16x256xi1>, vector<16x256xf32>
    %42 = arith.truncf %41 : vector<16x256xf32> to vector<16x256xbf16>
    %c0_20 = arith.constant 0 : index
    %c0_21 = arith.constant 0 : index
    %43 = vector.load %arg7[%c0_20, %c0_21] : memref<256x128xbf16, #tpu.memory_space<vmem>>, vector<256x128xbf16>
    %cst_22 = arith.constant dense<0.000000e+00> : vector<16x128xf32>
    %44 = tpu.matmul %42, %43, %cst_22 {dimension_numbers = #tpu.dot_dimension_numbers<[1], [0], [0], [1], [0, 0, 1, 1], [], []>} : vector<16x256xbf16>, vector<256x128xbf16>, vector<16x128xf32> -> vector<16x128xf32>
    %c0_23 = arith.constant 0 : index
    %c0_24 = arith.constant 0 : index
    %45 = vector.load %arg8[%c0_23, %c0_24] : memref<1x128xf32, #tpu.memory_space<vmem>>, vector<1x128xf32>
    %46 = vector.broadcast %45 : vector<1x128xf32> to vector<16x128xf32>
    %47 = arith.addf %44, %46 : vector<16x128xf32>
    %48 = math.tanh %47 : vector<16x128xf32>
    %c0_25 = arith.constant 0 : index
    %c0_26 = arith.constant 0 : index
    %49 = vector.load %arg10[%c0_25, %c0_26] : memref<16x128xf32, #tpu.memory_space<vmem>>, vector<16x128xf32>
    tpu.vector_store %arg10[%c0_25, %c0_26], %48 {strides = array<i32>} : memref<16x128xf32, #tpu.memory_space<vmem>>, vector<16x128xf32>,
    return
  }
  func.func @transform_0(%arg0: i32) -> (i32, i32) {
    %c0_i32 = arith.constant 0 : i32
    %c0_i32_0 = arith.constant 0 : i32
    return %arg0, %c0_i32 : i32, i32
  }
  func.func @transform_1(%arg0: i32) -> (i32, i32) {
    %c0_i32 = arith.constant 0 : i32
    %c0_i32_0 = arith.constant 0 : i32
    %c0_i32_1 = arith.constant 0 : i32
    return %c0_i32, %c0_i32_0 : i32, i32
  }
  func.func @transform_2(%arg0: i32) -> (i32, i32) {
    %c0_i32 = arith.constant 0 : i32
    %c0_i32_0 = arith.constant 0 : i32
    %c0_i32_1 = arith.constant 0 : i32
    return %c0_i32, %c0_i32_0 : i32, i32
  }
  func.func @transform_3(%arg0: i32) -> (i32, i32) {
    %c0_i32 = arith.constant 0 : i32
    %c0_i32_0 = arith.constant 0 : i32
    %c0_i32_1 = arith.constant 0 : i32
    return %c0_i32, %c0_i32_0 : i32, i32
  }
  func.func @transform_4(%arg0: i32) -> (i32, i32) {
    %c0_i32 = arith.constant 0 : i32
    %c0_i32_0 = arith.constant 0 : i32
    %c0_i32_1 = arith.constant 0 : i32
    return %c0_i32, %c0_i32_0 : i32, i32
  }
  func.func @transform_5(%arg0: i32) -> (i32, i32) {
    %c0_i32 = arith.constant 0 : i32
    %c0_i32_0 = arith.constant 0 : i32
    %c0_i32_1 = arith.constant 0 : i32
    return %c0_i32, %c0_i32_0 : i32, i32
  }
  func.func @transform_6(%arg0: i32) -> (i32, i32) {
    %c0_i32 = arith.constant 0 : i32
    %c0_i32_0 = arith.constant 0 : i32
    %c0_i32_1 = arith.constant 0 : i32
    return %c0_i32, %c0_i32_0 : i32, i32
  }
  func.func @transform_7(%arg0: i32) -> (i32, i32) {
    %c0_i32 = arith.constant 0 : i32
    %c0_i32_0 = arith.constant 0 : i32
    %c0_i32_1 = arith.constant 0 : i32
    return %c0_i32, %c0_i32_0 : i32, i32
  }
  func.func @transform_8(%arg0: i32) -> (i32, i32) {
    %c0_i32 = arith.constant 0 : i32
    %c0_i32_0 = arith.constant 0 : i32
    %c0_i32_1 = arith.constant 0 : i32
    return %c0_i32, %c0_i32_0 : i32, i32
  }
  func.func @transform_9(%arg0: i32) -> (i32, i32) {
    %c0_i32 = arith.constant 0 : i32
    %c0_i32_0 = arith.constant 0 : i32
    return %arg0, %c0_i32 : i32, i32
  }
}

</mosaic_0001>

<llo_original>
// kernel: tpu_custom_call.1
$region0: #{tpu_custom_call.1}
  #allocation0 [shape = 'u32[]', space=smem, size = 0x4, offset = 0x4, fixed_abs, tag = 'smem constant byte address 0x4 - core index']
  #allocation1 [shape = 'u32[144,128]{1,0:T(1,128)}', space=vmem, size = 0x12000, scoped, tag = 'internal scratch']
  #allocation2 [shape = 'f32[1,1]{1,0:T(1,128)S(1)}', space=vmem, size = 0x200, scoped, tag = 'scoped memory for tpu_custom_call.1']
  %s0 = inlined_call_operand.hbm [shape: f32[16,128], index: 0, kind: input, shape index: {}]
  %s1 = inlined_call_operand.hbm [shape: bf16[128,256], index: 1, kind: input, shape index: {}]
  %s2 = inlined_call_operand.vmem [shape: f32[1,256], index: 2, kind: input, shape index: {}]
  %s3 = inlined_call_operand.<no memory space> [shape: f32[1,1], index: 3, kind: input, shape index: {}]
  %s4 = inlined_call_operand.hbm [shape: bf16[256,256], index: 4, kind: input, shape index: {}]
  %s5 = inlined_call_operand.vmem [shape: f32[1,256], index: 5, kind: input, shape index: {}]
  %s6 = inlined_call_operand.hbm [shape: bf16[256,128], index: 6, kind: input, shape index: {}]
  %s7 = inlined_call_operand.vmem [shape: f32[1,128], index: 7, kind: input, shape index: {}]
  %s8 = inlined_call_operand.hbm [shape: bf16[256,256], index: 8, kind: input, shape index: {}]
  %s9 = inlined_call_operand.hbm [shape: f32[16,128], index: 9, kind: output, shape index: {}]
  %s10 = sld [smem:[#allocation0]]
  $region66: #{tpu_custom_call.1} parent=0
    _
  %s12 = ssub.s32 1, %s10
  %s13 = scalar_select 0, %s12, %s10
  %v14 = vstv %s3
  %15 = vst [vmem:[#allocation2] sm:$0x1] %v14
  $region1: #{tpu_custom_call.1} parent=0
    #allocation3 [shape = 'u8[8192]{0}', space=vmem, size = 0x2000, scoped, tag = 'input window, operand 0, single buffered']
    #allocation4 [shape = 's32[1]{0}', space=sflag, size = 0x4, scoped, tag = 'scoped memory for tpu_custom_call.1']
    #allocation5 [shape = 's32[1]{0}', space=sflag, size = 0x4, scoped, tag = 'scoped memory for tpu_custom_call.1']
    #allocation6 [shape = 'u8[65536]{0}', space=vmem, size = 0x10000, scoped, tag = 'input window, operand 1, single buffered']
    #allocation7 [shape = 's32[1]{0}', space=sflag, size = 0x4, scoped, tag = 'scoped memory for tpu_custom_call.1']
    #allocation8 [shape = 'u8[131072]{0}', space=vmem, size = 0x20000, scoped, tag = 'input window, operand 4, single buffered']
    #allocation9 [shape = 'u8[65536]{0}', space=vmem, size = 0x10000, scoped, tag = 'input window, operand 6, single buffered']
    #allocation10 [shape = 's32[1]{0}', space=sflag, size = 0x4, scoped, tag = 'scoped memory for tpu_custom_call.1']
    #allocation11 [shape = 'u8[131072]{0}', space=vmem, size = 0x20000, scoped, tag = 'input window, operand 8, single buffered']
    #allocation12 [shape = 'u8[8192]{0}', space=vmem, size = 0x2000, scoped, tag = 'output window, operand 0, single buffered']
    %16 = vsyncpa [#allocation4], 0
    %17 = vsyncpa [#allocation7], 0
    %18 = vsyncpa [#allocation10], 0
    %19 = vsyncpa [#allocation5], 0
    // Predicated region
    $region2: #{tpu_custom_call.1} parent=1 // pred_check
      _
    $region3: #{tpu_custom_call.1} parent=1 // pred_check_branch
      %21 = sbr.rel (0) target = $region5
    $region4: #{tpu_custom_call.1} parent=1 // pred_region
      %s23 = ssub.s32 256, 256
      %24 = vsyncadd [#allocation4], %s23
      %s25 = sshll.u32 [#allocation3], 4
      %s26 = int_to_ptr.vmem [resolvable:$true] %s25
      %31 = dma.hbm_to_vmem [thread:$0]  %s0, 256, %s26, [#allocation4], 128, 128, 8
    $region5: #{tpu_custom_call.1} parent=1 // pred_fallthru
      _
    // Predicated region
    $region6: #{tpu_custom_call.1} parent=1 // pred_check
      _
    $region7: #{tpu_custom_call.1} parent=1 // pred_check_branch
      %33 = sbr.rel (0) target = $region9
    $region8: #{tpu_custom_call.1} parent=1 // pred_region
      %s35 = ssub.s32 2048, 2048
      %36 = vsyncadd [#allocation7], %s35
      %s37 = sshll.u32 [#allocation6], 4
      %s38 = int_to_ptr.vmem [resolvable:$true] %s37
      %43 = dma.hbm_to_vmem [thread:$0]  %s1, 2048, %s38, [#allocation7], 128, 128, 8
    $region9: #{tpu_custom_call.1} parent=1 // pred_fallthru
      _
    // Predicated region
    $region10: #{tpu_custom_call.1} parent=1 // pred_check
      _
    $region11: #{tpu_custom_call.1} parent=1 // pred_check_branch
      %45 = sbr.rel (0) target = $region13
    $region12: #{tpu_custom_call.1} parent=1 // pred_region
      _
    $region13: #{tpu_custom_call.1} parent=1 // pred_fallthru
      _
    // Predicated region
    $region14: #{tpu_custom_call.1} parent=1 // pred_check
      _
    $region15: #{tpu_custom_call.1} parent=1 // pred_check_branch
      %47 = sbr.rel (0) target = $region17
    $region16: #{tpu_custom_call.1} parent=1 // pred_region
      _
    $region17: #{tpu_custom_call.1} parent=1 // pred_fallthru
      _
    // Predicated region
    $region18: #{tpu_custom_call.1} parent=1 // pred_check
      _
    $region19: #{tpu_custom_call.1} parent=1 // pred_check_branch
      %49 = sbr.rel (0) target = $region21
    $region20: #{tpu_custom_call.1} parent=1 // pred_region
      %s51 = ssub.s32 4096, 4096
      %52 = vsyncadd [#allocation7], %s51
      %s53 = sshll.u32 [#allocation8], 4
      %s54 = int_to_ptr.vmem [resolvable:$true] %s53
      %59 = dma.hbm_to_vmem [thread:$0]  %s4, 4096, %s54, [#allocation7], 128, 128, 8
    $region21: #{tpu_custom_call.1} parent=1 // pred_fallthru
      _
    // Predicated region
    $region22: #{tpu_custom_call.1} parent=1 // pred_check
      _
    $region23: #{tpu_custom_call.1} parent=1 // pred_check_branch
      %61 = sbr.rel (0) target = $region25
    $region24: #{tpu_custom_call.1} parent=1 // pred_region
      _
    $region25: #{tpu_custom_call.1} parent=1 // pred_fallthru
      _
    // Predicated region
    $region26: #{tpu_custom_call.1} parent=1 // pred_check
      _
    $region27: #{tpu_custom_call.1} parent=1 // pred_check_branch
      %63 = sbr.rel (0) target = $region29
    $region28: #{tpu_custom_call.1} parent=1 // pred_region
      %s65 = ssub.s32 2048, 2048
      %66 = vsyncadd [#allocation10], %s65
      %s67 = sshll.u32 [#allocation9], 4
      %s68 = int_to_ptr.vmem [resolvable:$true] %s67
      %73 = dma.hbm_to_vmem [thread:$0]  %s6, 2048, %s68, [#allocation10], 64, 64, 4
    $region29: #{tpu_custom_call.1} parent=1 // pred_fallthru
      _
    // Predicated region
    $region30: #{tpu_custom_call.1} parent=1 // pred_check
      _
    $region31: #{tpu_custom_call.1} parent=1 // pred_check_branch
      %75 = sbr.rel (0) target = $region33
    $region32: #{tpu_custom_call.1} parent=1 // pred_region
      _
    $region33: #{tpu_custom_call.1} parent=1 // pred_fallthru
      _
    // Predicated region
    $region34: #{tpu_custom_call.1} parent=1 // pred_check
      _
    $region35: #{tpu_custom_call.1} parent=1 // pred_check_branch
      %77 = sbr.rel (0) target = $region37
    $region36: #{tpu_custom_call.1} parent=1 // pred_region
      %s79 = ssub.s32 4096, 4096
      %80 = vsyncadd [#allocation10], %s79
      %s81 = sshll.u32 [#allocation11], 4
      %s82 = int_to_ptr.vmem [resolvable:$true] %s81
      %87 = dma.hbm_to_vmem [thread:$0]  %s8, 4096, %s82, [#allocation10], 128, 128, 8
    $region37: #{tpu_custom_call.1} parent=1 // pred_fallthru
      _
    // Predicated region
    $region38: #{tpu_custom_call.1} parent=1 // pred_check
      _
    $region39: #{tpu_custom_call.1} parent=1 // pred_check_branch
      %89 = sbr.rel (0) target = $region41
    $region40: #{tpu_custom_call.1} parent=1 // pred_region
      %90 = dma.done [#allocation4], 256
    $region41: #{tpu_custom_call.1} parent=1 // pred_fallthru
      _
    // Predicated region
    $region42: #{tpu_custom_call.1} parent=1 // pred_check
      _
    $region43: #{tpu_custom_call.1} parent=1 // pred_check_branch
      %92 = sbr.rel (0) target = $region45
    $region44: #{tpu_custom_call.1} parent=1 // pred_region
      %93 = dma.done [#allocation7], 2048
    $region45: #{tpu_custom_call.1} parent=1 // pred_fallthru
      _
    // Predicated region
    $region46: #{tpu_custom_call.1} parent=1 // pred_check
      _
    $region47: #{tpu_custom_call.1} parent=1 // pred_check_branch
      %95 = sbr.rel (0) target = $region49
    $region48: #{tpu_custom_call.1} parent=1 // pred_region
      %96 = dma.done [#allocation7], 4096
    $region49: #{tpu_custom_call.1} parent=1 // pred_fallthru
      _
    // Predicated region
    $region50: #{tpu_custom_call.1} parent=1 // pred_check
      _
    $region51: #{tpu_custom_call.1} parent=1 // pred_check_branch
      %98 = sbr.rel (0) target = $region53
    $region52: #{tpu_custom_call.1} parent=1 // pred_region
      %99 = dma.done [#allocation10], 2048
    $region53: #{tpu_custom_call.1} parent=1 // pred_fallthru
      _
    // Predicated region
    $region54: #{tpu_custom_call.1} parent=1 // pred_check
      _
    $region55: #{tpu_custom_call.1} parent=1 // pred_check_branch
      %101 = sbr.rel (0) target = $region57
    $region56: #{tpu_custom_call.1} parent=1 // pred_region
      %102 = dma.done [#allocation10], 4096
    $region57: #{tpu_custom_call.1} parent=1 // pred_fallthru
      _
    %v104 = vld [vmem:[#allocation3] sm:$0xff]
    %v105 = vld [vmem:[#allocation3 + $0x8] sm:$0xff]
    %v106 = vpack.c.bf16 %v105, %v104
    %v107 = vld [vmem:[#allocation6] sm:$0xff]
    %v108 = vld [vmem:[#allocation6 + $0x8] sm:$0xff]
    %v109 = vld [vmem:[#allocation6 + $0x10] sm:$0xff]
    %v110 = vld [vmem:[#allocation6 + $0x18] sm:$0xff]
    %v111 = vld [vmem:[#allocation6 + $0x20] sm:$0xff]
    %v112 = vld [vmem:[#allocation6 + $0x28] sm:$0xff]
    %v113 = vld [vmem:[#allocation6 + $0x30] sm:$0xff]
    %v114 = vld [vmem:[#allocation6 + $0x38] sm:$0xff]
    %v115 = vld [vmem:[#allocation6 + $0x40] sm:$0xff]
    %v116 = vld [vmem:[#allocation6 + $0x48] sm:$0xff]
    %v117 = vld [vmem:[#allocation6 + $0x50] sm:$0xff]
    %v118 = vld [vmem:[#allocation6 + $0x58] sm:$0xff]
    %v119 = vld [vmem:[#allocation6 + $0x60] sm:$0xff]
    %v120 = vld [vmem:[#allocation6 + $0x68] sm:$0xff]
    %v121 = vld [vmem:[#allocation6 + $0x70] sm:$0xff]
    %v122 = vld [vmem:[#allocation6 + $0x78] sm:$0xff]
    %v123 = vld [vmem:[%s2] sm:$0x3]
    %v125 = vlaneseq
    %v126 = vshrl.u32 %v125, 7
    %v127 = vsub.s32 0, %v126
    %v128 = vrot.slane %v123, %v127
    %v129 = vlaneseq
    %v130 = vshrl.u32 %v129, 7
    %v131 = vsub.s32 1, %v130
    %v132 = vrot.slane %v123, %v131
    %v151 = vunpack.c.l.b16 %v107
    %v152 = vunpack.c.h.b16 %v107
    %v153 = vunpack.c.l.b16 %v108
    %v154 = vunpack.c.h.b16 %v108
    %v155 = vunpack.c.l.b16 %v109
    %v156 = vunpack.c.h.b16 %v109
    %v157 = vunpack.c.l.b16 %v110
    %v158 = vunpack.c.h.b16 %v110
    %v159 = vunpack.c.l.b16 %v111
    %v160 = vunpack.c.h.b16 %v111
    %v161 = vunpack.c.l.b16 %v112
    %v162 = vunpack.c.h.b16 %v112
    %v163 = vunpack.c.l.b16 %v113
    %v164 = vunpack.c.h.b16 %v113
    %v165 = vunpack.c.l.b16 %v114
    %v166 = vunpack.c.h.b16 %v114
    %v167 = vunpack.c.l.b16 %v115
    %v168 = vunpack.c.h.b16 %v115
    %v169 = vunpack.c.l.b16 %v116
    %v170 = vunpack.c.h.b16 %v116
    %v171 = vunpack.c.l.b16 %v117
    %v172 = vunpack.c.h.b16 %v117
    %v173 = vunpack.c.l.b16 %v118
    %v174 = vunpack.c.h.b16 %v118
    %v175 = vunpack.c.l.b16 %v119
    %v176 = vunpack.c.h.b16 %v119
    %v177 = vunpack.c.l.b16 %v120
    %v178 = vunpack.c.h.b16 %v120
    %v179 = vunpack.c.l.b16 %v121
    %v180 = vunpack.c.h.b16 %v121
    %v181 = vunpack.c.l.b16 %v122
    %v182 = vunpack.c.h.b16 %v122
    %v183 = vpack.c.b16 %v153, %v151
    %v184 = vpack.c.b16 %v154, %v152
    %v185 = vpack.c.b16 %v157, %v155
    %v186 = vpack.c.b16 %v158, %v156
    %v187 = vpack.c.b16 %v161, %v159
    %v188 = vpack.c.b16 %v162, %v160
    %v189 = vpack.c.b16 %v165, %v163
    %v190 = vpack.c.b16 %v166, %v164
    %v191 = vpack.c.b16 %v169, %v167
    %v192 = vpack.c.b16 %v170, %v168
    %v193 = vpack.c.b16 %v173, %v171
    %v194 = vpack.c.b16 %v174, %v172
    %v195 = vpack.c.b16 %v177, %v175
    %v196 = vpack.c.b16 %v178, %v176
    %v197 = vpack.c.b16 %v181, %v179
    %v198 = vpack.c.b16 %v182, %v180
    %215 = vmatprep.subr.bf16.mxu0 %v184
    %216 = vmatpush1.bf16.msra.mxu0 %v183
    %217 = vmatprep.subr.bf16.mxu0 %v186
    %218 = vmatpush1.bf16.msra.mxu0 %v185
    %219 = vmatprep.subr.bf16.mxu0 %v188
    %220 = vmatpush1.bf16.msra.mxu0 %v187
    %221 = vmatprep.subr.bf16.mxu0 %v190
    %222 = vmatpush1.bf16.msra.mxu0 %v189
    %223 = vmatprep.subr.bf16.mxu0 %v192
    %224 = vmatpush1.bf16.msra.mxu0 %v191
    %225 = vmatprep.subr.bf16.mxu0 %v194
    %226 = vmatpush1.bf16.msra.mxu0 %v193
    %227 = vmatprep.subr.bf16.mxu0 %v196
    %228 = vmatpush1.bf16.msra.mxu0 %v195
    %229 = vmatprep.subr.bf16.mxu0 %v198
    %230 = vmatpush1.bf16.msra.mxu0 %v197
    %231 = vmatprep.subr.bf16.mxu0 0
    %232 = vmatpush1.bf16.msra.mxu0 0
    %233 = vmatprep.subr.bf16.mxu0 0
    %234 = vmatpush1.bf16.msra.mxu0 0
    %235 = vmatprep.subr.bf16.mxu0 0
    %236 = vmatpush1.bf16.msra.mxu0 0
    %237 = vmatprep.subr.bf16.mxu0 0
    %238 = vmatpush1.bf16.msra.mxu0 0
    %239 = vmatprep.subr.bf16.mxu0 0
    %240 = vmatpush1.bf16.msra.mxu0 0
    %241 = vmatprep.subr.bf16.mxu0 0
    %242 = vmatpush1.bf16.msra.mxu0 0
    %243 = vmatprep.subr.bf16.mxu0 0
    %244 = vmatpush1.bf16.msra.mxu0 0
    %245 = vmatprep.subr.bf16.mxu0 0
    %246 = vmatpush1.bf16.msra.mxu0 0
    %247 = vmatprep.mubr.bf16.mxu0 0
    %248 = vmatmul.mubr.bf16.gmra.mrb[0].mxu0 %v106
    %v249 = vpop.f32.mrb[0].mxu0
    %v250 = vadd.f32 %v128, %v249
    %v251 = vpop.f32.mrb[0].mxu0
    %v252 = vadd.f32 %v132, %v251
    %v253 = vpop.f32.mrb[0].mxu0
    %v254 = vadd.f32 %v128, %v253
    %v255 = vpop.f32.mrb[0].mxu0
    %v256 = vadd.f32 %v132, %v255
    %257 = vdwg.mxu0
    %vm258 = vcmp.gt.f32.partialorder %v250, 0.0
    %vm259 = vcmp.gt.f32.partialorder %v252, 0.0
    %vm260 = vcmp.gt.f32.partialorder %v254, 0.0
    %vm261 = vcmp.gt.f32.partialorder %v256, 0.0
    %v262 = vld [vmem:[#allocation2] sm:$0x1]
    %v264 = vlaneseq
    %v265 = vshrl.u32 %v264, 7
    %v266 = vsub.s32 0, %v265
    %v267 = vrot.slane %v262, %v266
    %268 = vset.pattern.permute.xlu0 0
    %269 = vperm.xlu0 %268, %v267
    %v270 = vpop.permute.xlu0 %269
    %v272 = vmul.f32 %v270, %v250
    %v273 = vmul.f32 %v270, %v252
    %v274 = vmul.f32 %v270, %v254
    %v275 = vmul.f32 %v270, %v256
    %v276 = vsel %vm258, %v250, %v272
    %v277 = vsel %vm259, %v252, %v273
    %v278 = vsel %vm260, %v254, %v274
    %v279 = vsel %vm261, %v256, %v275
    %v280 = vpack.c.bf16 %v278, %v276
    %v281 = vpack.c.bf16 %v279, %v277
    %v282 = vmul.f32 %v276, %v276
    %v283 = vmul.f32 %v277, %v277
    %v284 = vmul.f32 %v278, %v278
    %v285 = vmul.f32 %v279, %v279
    %v286 = vpack.c.bf16 %v284, %v282
    %v287 = vpack.c.bf16 %v285, %v283
    %v288 = vld [vmem:[#allocation11] sm:$0xff]
    %v289 = vld [vmem:[#allocation11 + $0x8] sm:$0xff]
    %v290 = vld [vmem:[#allocation11 + $0x10] sm:$0xff]
    %v291 = vld [vmem:[#allocation11 + $0x18] sm:$0xff]
    %v292 = vld [vmem:[#allocation11 + $0x20] sm:$0xff]
    %v293 = vld [vmem:[#allocation11 + $0x28] sm:$0xff]
    %v294 = vld [vmem:[#allocation11 + $0x30] sm:$0xff]
    %v295 = vld [vmem:[#allocation11 + $0x38] sm:$0xff]
    %v296 = vld [vmem:[#allocation11 + $0x40] sm:$0xff]
    %v297 = vld [vmem:[#allocation11 + $0x48] sm:$0xff]
    %v298 = vld [vmem:[#allocation11 + $0x50] sm:$0xff]
    %v299 = vld [vmem:[#allocation11 + $0x58] sm:$0xff]
    %v300 = vld [vmem:[#allocation11 + $0x60] sm:$0xff]
    %v301 = vld [vmem:[#allocation11 + $0x68] sm:$0xff]
    %v302 = vld [vmem:[#allocation11 + $0x70] sm:$0xff]
    %v303 = vld [vmem:[#allocation11 + $0x78] sm:$0xff]
    %v304 = vld [vmem:[#allocation11 + $0x80] sm:$0xff]
    %v305 = vld [vmem:[#allocation11 + $0x88] sm:$0xff]
    %v306 = vld [vmem:[#allocation11 + $0x90] sm:$0xff]
    %v307 = vld [vmem:[#allocation11 + $0x98] sm:$0xff]
    %v308 = vld [vmem:[#allocation11 + $0xa0] sm:$0xff]
    %v309 = vld [vmem:[#allocation11 + $0xa8] sm:$0xff]
    %v310 = vld [vmem:[#allocation11 + $0xb0] sm:$0xff]
    %v311 = vld [vmem:[#allocation11 + $0xb8] sm:$0xff]
    %v312 = vld [vmem:[#allocation11 + $0xc0] sm:$0xff]
    %v313 = vld [vmem:[#allocation11 + $0xc8] sm:$0xff]
    %v314 = vld [vmem:[#allocation11 + $0xd0] sm:$0xff]
    %v315 = vld [vmem:[#allocation11 + $0xd8] sm:$0xff]
    %v316 = vld [vmem:[#allocation11 + $0xe0] sm:$0xff]
    %v317 = vld [vmem:[#allocation11 + $0xe8] sm:$0xff]
    %v318 = vld [vmem:[#allocation11 + $0xf0] sm:$0xff]
    %v319 = vld [vmem:[#allocation11 + $0xf8] sm:$0xff]
    %v352 = vunpack.c.l.b16 %v288
    %v353 = vunpack.c.h.b16 %v288
    %v354 = vunpack.c.l.b16 %v289
    %v355 = vunpack.c.h.b16 %v289
    %v356 = vunpack.c.l.b16 %v290
    %v357 = vunpack.c.h.b16 %v290
    %v358 = vunpack.c.l.b16 %v291
    %v359 = vunpack.c.h.b16 %v291
    %v360 = vunpack.c.l.b16 %v292
    %v361 = vunpack.c.h.b16 %v292
    %v362 = vunpack.c.l.b16 %v293
    %v363 = vunpack.c.h.b16 %v293
    %v364 = vunpack.c.l.b16 %v294
    %v365 = vunpack.c.h.b16 %v294
    %v366 = vunpack.c.l.b16 %v295
    %v367 = vunpack.c.h.b16 %v295
    %v368 = vunpack.c.l.b16 %v296
    %v369 = vunpack.c.h.b16 %v296
    %v370 = vunpack.c.l.b16 %v297
    %v371 = vunpack.c.h.b16 %v297
    %v372 = vunpack.c.l.b16 %v298
    %v373 = vunpack.c.h.b16 %v298
    %v374 = vunpack.c.l.b16 %v299
    %v375 = vunpack.c.h.b16 %v299
    %v376 = vunpack.c.l.b16 %v300
    %v377 = vunpack.c.h.b16 %v300
    %v378 = vunpack.c.l.b16 %v301
    %v379 = vunpack.c.h.b16 %v301
    %v380 = vunpack.c.l.b16 %v302
    %v381 = vunpack.c.h.b16 %v302
    %v382 = vunpack.c.l.b16 %v303
    %v383 = vunpack.c.h.b16 %v303
    %v384 = vunpack.c.l.b16 %v304
    %v385 = vunpack.c.h.b16 %v304
    %v386 = vunpack.c.l.b16 %v305
    %v387 = vunpack.c.h.b16 %v305
    %v388 = vunpack.c.l.b16 %v306
    %v389 = vunpack.c.h.b16 %v306
    %v390 = vunpack.c.l.b16 %v307
    %v391 = vunpack.c.h.b16 %v307
    %v392 = vunpack.c.l.b16 %v308
    %v393 = vunpack.c.h.b16 %v308
    %v394 = vunpack.c.l.b16 %v309
    %v395 = vunpack.c.h.b16 %v309
    %v396 = vunpack.c.l.b16 %v310
    %v397 = vunpack.c.h.b16 %v310
    %v398 = vunpack.c.l.b16 %v311
    %v399 = vunpack.c.h.b16 %v311
    %v400 = vunpack.c.l.b16 %v312
    %v401 = vunpack.c.h.b16 %v312
    %v402 = vunpack.c.l.b16 %v313
    %v403 = vunpack.c.h.b16 %v313
    %v404 = vunpack.c.l.b16 %v314
    %v405 = vunpack.c.h.b16 %v314
    %v406 = vunpack.c.l.b16 %v315
    %v407 = vunpack.c.h.b16 %v315
    %v408 = vunpack.c.l.b16 %v316
    %v409 = vunpack.c.h.b16 %v316
    %v410 = vunpack.c.l.b16 %v317
    %v411 = vunpack.c.h.b16 %v317
    %v412 = vunpack.c.l.b16 %v318
    %v413 = vunpack.c.h.b16 %v318
    %v414 = vunpack.c.l.b16 %v319
    %v415 = vunpack.c.h.b16 %v319
    %v416 = vpack.c.b16 %v354, %v352
    %v417 = vpack.c.b16 %v355, %v353
    %v418 = vpack.c.b16 %v358, %v356
    %v419 = vpack.c.b16 %v359, %v357
    %v420 = vpack.c.b16 %v362, %v360
    %v421 = vpack.c.b16 %v363, %v361
    %v422 = vpack.c.b16 %v366, %v364
    %v423 = vpack.c.b16 %v367, %v365
    %v424 = vpack.c.b16 %v370, %v368
    %v425 = vpack.c.b16 %v371, %v369
    %v426 = vpack.c.b16 %v374, %v372
    %v427 = vpack.c.b16 %v375, %v373
    %v428 = vpack.c.b16 %v378, %v376
    %v429 = vpack.c.b16 %v379, %v377
    %v430 = vpack.c.b16 %v382, %v380
    %v431 = vpack.c.b16 %v383, %v381
    %v432 = vpack.c.b16 %v386, %v384
    %v433 = vpack.c.b16 %v387, %v385
    %v434 = vpack.c.b16 %v390, %v388
    %v435 = vpack.c.b16 %v391, %v389
    %v436 = vpack.c.b16 %v394, %v392
    %v437 = vpack.c.b16 %v395, %v393
    %v438 = vpack.c.b16 %v398, %v396
    %v439 = vpack.c.b16 %v399, %v397
    %v440 = vpack.c.b16 %v402, %v400
    %v441 = vpack.c.b16 %v403, %v401
    %v442 = vpack.c.b16 %v406, %v404
    %v443 = vpack.c.b16 %v407, %v405
    %v444 = vpack.c.b16 %v410, %v408
    %v445 = vpack.c.b16 %v411, %v409
    %v446 = vpack.c.b16 %v414, %v412
    %v447 = vpack.c.b16 %v415, %v413
    %480 = vmatprep.subr.bf16.mxu0 %v417
    %481 = vmatpush1.bf16.msra.mxu0 %v416
    %482 = vmatprep.subr.bf16.mxu0 %v419
    %483 = vmatpush1.bf16.msra.mxu0 %v418
    %484 = vmatprep.subr.bf16.mxu0 %v421
    %485 = vmatpush1.bf16.msra.mxu0 %v420
    %486 = vmatprep.subr.bf16.mxu0 %v423
    %487 = vmatpush1.bf16.msra.mxu0 %v422
    %488 = vmatprep.subr.bf16.mxu0 %v425
    %489 = vmatpush1.bf16.msra.mxu0 %v424
    %490 = vmatprep.subr.bf16.mxu0 %v427
    %491 = vmatpush1.bf16.msra.mxu0 %v426
    %492 = vmatprep.subr.bf16.mxu0 %v429
    %493 = vmatpush1.bf16.msra.mxu0 %v428
    %494 = vmatprep.subr.bf16.mxu0 %v431
    %495 = vmatpush1.bf16.msra.mxu0 %v430
    %496 = vmatprep.subr.bf16.mxu0 %v433
    %497 = vmatpush1.bf16.msra.mxu0 %v432
    %498 = vmatprep.subr.bf16.mxu0 %v435
    %499 = vmatpush1.bf16.msra.mxu0 %v434
    %500 = vmatprep.subr.bf16.mxu0 %v437
    %501 = vmatpush1.bf16.msra.mxu0 %v436
    %502 = vmatprep.subr.bf16.mxu0 %v439
    %503 = vmatpush1.bf16.msra.mxu0 %v438
    %504 = vmatprep.subr.bf16.mxu0 %v441
    %505 = vmatpush1.bf16.msra.mxu0 %v440
    %506 = vmatprep.subr.bf16.mxu0 %v443
    %507 = vmatpush1.bf16.msra.mxu0 %v442
    %508 = vmatprep.subr.bf16.mxu0 %v445
    %509 = vmatpush1.bf16.msra.mxu0 %v444
    %510 = vmatprep.subr.bf16.mxu0 %v447
    %511 = vmatpush1.bf16.msra.mxu0 %v446
    %512 = vmatprep.mubr.bf16.mxu0 %v281
    %513 = vmatmul.mubr.bf16.gmra.mrb[0].mxu0 %v280
    %v514 = vpop.f32.mrb[0].mxu0
    %v515 = vadd.f32 0.0, %v514
    %v516 = vpop.f32.mrb[0].mxu0
    %v517 = vadd.f32 0.0, %v516
    %v518 = vpop.f32.mrb[0].mxu0
    %v519 = vadd.f32 0.0, %v518
    %v520 = vpop.f32.mrb[0].mxu0
    %v521 = vadd.f32 0.0, %v520
    %522 = vmatprep.mubr.bf16.mxu0 %v287
    %523 = vmatmul.mubr.bf16.gmra.mrb[0].mxu0 %v286
    %v524 = vpop.f32.mrb[0].mxu0
    %v525 = vadd.f32 0.0, %v524
    %v526 = vpop.f32.mrb[0].mxu0
    %v527 = vadd.f32 0.0, %v526
    %v528 = vpop.f32.mrb[0].mxu0
    %v529 = vadd.f32 0.0, %v528
    %v530 = vpop.f32.mrb[0].mxu0
    %v531 = vadd.f32 0.0, %v530
    %532 = vdwg.mxu0
    %v533 = vmul.f32 %v515, %v515
    %v534 = vmul.f32 %v517, %v517
    %v535 = vmul.f32 %v519, %v519
    %v536 = vmul.f32 %v521, %v521
    %v537 = vsub.f32 %v525, %v533
    %v538 = vsub.f32 %v527, %v534
    %v539 = vsub.f32 %v529, %v535
    %v540 = vsub.f32 %v531, %v536
    %v541 = vmax.f32 %v537, 0.0
    %v542 = vmax.f32 %v538, 0.0
    %v543 = vmax.f32 %v539, 0.0
    %v544 = vmax.f32 %v540, 0.0
    %v545 = vsub.f32 %v276, %v515
    %v546 = vsub.f32 %v277, %v517
    %v547 = vsub.f32 %v278, %v519
    %v548 = vsub.f32 %v279, %v521
    %v549 = vadd.f32 %v541, 1e-05
    %v550 = vadd.f32 %v542, 1e-05
    %v551 = vadd.f32 %v543, 1e-05
    %v552 = vadd.f32 %v544, 1e-05
    %v553 = vrsqrt.pop %v549
    %v554 = vrsqrt.pop %v550
    %v555 = vrsqrt.pop %v551
    %v556 = vrsqrt.pop %v552
    %v557 = vmul.f32 %v545, %v553
    %v558 = vmul.f32 %v546, %v554
    %v559 = vmul.f32 %v547, %v555
    %v560 = vmul.f32 %v548, %v556
    %v561 = vpack.c.bf16 %v559, %v557
    %v562 = vpack.c.bf16 %v560, %v558
    %v563 = vld [vmem:[#allocation8] sm:$0xff]
    %v564 = vld [vmem:[#allocation8 + $0x8] sm:$0xff]
    %v565 = vld [vmem:[#allocation8 + $0x10] sm:$0xff]
    %v566 = vld [vmem:[#allocation8 + $0x18] sm:$0xff]
    %v567 = vld [vmem:[#allocation8 + $0x20] sm:$0xff]
    %v568 = vld [vmem:[#allocation8 + $0x28] sm:$0xff]
    %v569 = vld [vmem:[#allocation8 + $0x30] sm:$0xff]
    %v570 = vld [vmem:[#allocation8 + $0x38] sm:$0xff]
    %v571 = vld [vmem:[#allocation8 + $0x40] sm:$0xff]
    %v572 = vld [vmem:[#allocation8 + $0x48] sm:$0xff]
    %v573 = vld [vmem:[#allocation8 + $0x50] sm:$0xff]
    %v574 = vld [vmem:[#allocation8 + $0x58] sm:$0xff]
    %v575 = vld [vmem:[#allocation8 + $0x60] sm:$0xff]
    %v576 = vld [vmem:[#allocation8 + $0x68] sm:$0xff]
    %v577 = vld [vmem:[#allocation8 + $0x70] sm:$0xff]
    %v578 = vld [vmem:[#allocation8 + $0x78] sm:$0xff]
    %v579 = vld [vmem:[#allocation8 + $0x80] sm:$0xff]
    %v580 = vld [vmem:[#allocation8 + $0x88] sm:$0xff]
    %v581 = vld [vmem:[#allocation8 + $0x90] sm:$0xff]
    %v582 = vld [vmem:[#allocation8 + $0x98] sm:$0xff]
    %v583 = vld [vmem:[#allocation8 + $0xa0] sm:$0xff]
    %v584 = vld [vmem:[#allocation8 + $0xa8] sm:$0xff]
    %v585 = vld [vmem:[#allocation8 + $0xb0] sm:$0xff]
    %v586 = vld [vmem:[#allocation8 + $0xb8] sm:$0xff]
    %v587 = vld [vmem:[#allocation8 + $0xc0] sm:$0xff]
    %v588 = vld [vmem:[#allocation8 + $0xc8] sm:$0xff]
    %v589 = vld [vmem:[#allocation8 + $0xd0] sm:$0xff]
    %v590 = vld [vmem:[#allocation8 + $0xd8] sm:$0xff]
    %v591 = vld [vmem:[#allocation8 + $0xe0] sm:$0xff]
    %v592 = vld [vmem:[#allocation8 + $0xe8] sm:$0xff]
    %v593 = vld [vmem:[#allocation8 + $0xf0] sm:$0xff]
    %v594 = vld [vmem:[#allocation8 + $0xf8] sm:$0xff]
    %v595 = vld [vmem:[%s5] sm:$0x3]
    %v597 = vlaneseq
    %v598 = vshrl.u32 %v597, 7
    %v599 = vsub.s32 0, %v598
    %v600 = vrot.slane %v595, %v599
    %v601 = vlaneseq
    %v602 = vshrl.u32 %v601, 7
    %v603 = vsub.s32 1, %v602
    %v604 = vrot.slane %v595, %v603
    %v639 = vunpack.c.l.b16 %v563
    %v640 = vunpack.c.h.b16 %v563
    %v641 = vunpack.c.l.b16 %v564
    %v642 = vunpack.c.h.b16 %v564
    %v643 = vunpack.c.l.b16 %v565
    %v644 = vunpack.c.h.b16 %v565
    %v645 = vunpack.c.l.b16 %v566
    %v646 = vunpack.c.h.b16 %v566
    %v647 = vunpack.c.l.b16 %v567
    %v648 = vunpack.c.h.b16 %v567
    %v649 = vunpack.c.l.b16 %v568
    %v650 = vunpack.c.h.b16 %v568
    %v651 = vunpack.c.l.b16 %v569
    %v652 = vunpack.c.h.b16 %v569
    %v653 = vunpack.c.l.b16 %v570
    %v654 = vunpack.c.h.b16 %v570
    %v655 = vunpack.c.l.b16 %v571
    %v656 = vunpack.c.h.b16 %v571
    %v657 = vunpack.c.l.b16 %v572
    %v658 = vunpack.c.h.b16 %v572
    %v659 = vunpack.c.l.b16 %v573
    %v660 = vunpack.c.h.b16 %v573
    %v661 = vunpack.c.l.b16 %v574
    %v662 = vunpack.c.h.b16 %v574
    %v663 = vunpack.c.l.b16 %v575
    %v664 = vunpack.c.h.b16 %v575
    %v665 = vunpack.c.l.b16 %v576
    %v666 = vunpack.c.h.b16 %v576
    %v667 = vunpack.c.l.b16 %v577
    %v668 = vunpack.c.h.b16 %v577
    %v669 = vunpack.c.l.b16 %v578
    %v670 = vunpack.c.h.b16 %v578
    %v671 = vunpack.c.l.b16 %v579
    %v672 = vunpack.c.h.b16 %v579
    %v673 = vunpack.c.l.b16 %v580
    %v674 = vunpack.c.h.b16 %v580
    %v675 = vunpack.c.l.b16 %v581
    %v676 = vunpack.c.h.b16 %v581
    %v677 = vunpack.c.l.b16 %v582
    %v678 = vunpack.c.h.b16 %v582
    %v679 = vunpack.c.l.b16 %v583
    %v680 = vunpack.c.h.b16 %v583
    %v681 = vunpack.c.l.b16 %v584
    %v682 = vunpack.c.h.b16 %v584
    %v683 = vunpack.c.l.b16 %v585
    %v684 = vunpack.c.h.b16 %v585
    %v685 = vunpack.c.l.b16 %v586
    %v686 = vunpack.c.h.b16 %v586
    %v687 = vunpack.c.l.b16 %v587
    %v688 = vunpack.c.h.b16 %v587
    %v689 = vunpack.c.l.b16 %v588
    %v690 = vunpack.c.h.b16 %v588
    %v691 = vunpack.c.l.b16 %v589
    %v692 = vunpack.c.h.b16 %v589
    %v693 = vunpack.c.l.b16 %v590
    %v694 = vunpack.c.h.b16 %v590
    %v695 = vunpack.c.l.b16 %v591
    %v696 = vunpack.c.h.b16 %v591
    %v697 = vunpack.c.l.b16 %v592
    %v698 = vunpack.c.h.b16 %v592
    %v699 = vunpack.c.l.b16 %v593
    %v700 = vunpack.c.h.b16 %v593
    %v701 = vunpack.c.l.b16 %v594
    %v702 = vunpack.c.h.b16 %v594
    %v703 = vpack.c.b16 %v641, %v639
    %v704 = vpack.c.b16 %v642, %v640
    %v705 = vpack.c.b16 %v645, %v643
    %v706 = vpack.c.b16 %v646, %v644
    %v707 = vpack.c.b16 %v649, %v647
    %v708 = vpack.c.b16 %v650, %v648
    %v709 = vpack.c.b16 %v653, %v651
    %v710 = vpack.c.b16 %v654, %v652
    %v711 = vpack.c.b16 %v657, %v655
    %v712 = vpack.c.b16 %v658, %v656
    %v713 = vpack.c.b16 %v661, %v659
    %v714 = vpack.c.b16 %v662, %v660
    %v715 = vpack.c.b16 %v665, %v663
    %v716 = vpack.c.b16 %v666, %v664
    %v717 = vpack.c.b16 %v669, %v667
    %v718 = vpack.c.b16 %v670, %v668
    %v719 = vpack.c.b16 %v673, %v671
    %v720 = vpack.c.b16 %v674, %v672
    %v721 = vpack.c.b16 %v677, %v675
    %v722 = vpack.c.b16 %v678, %v676
    %v723 = vpack.c.b16 %v681, %v679
    %v724 = vpack.c.b16 %v682, %v680
    %v725 = vpack.c.b16 %v685, %v683
    %v726 = vpack.c.b16 %v686, %v684
    %v727 = vpack.c.b16 %v689, %v687
    %v728 = vpack.c.b16 %v690, %v688
    %v729 = vpack.c.b16 %v693, %v691
    %v730 = vpack.c.b16 %v694, %v692
    %v731 = vpack.c.b16 %v697, %v695
    %v732 = vpack.c.b16 %v698, %v696
    %v733 = vpack.c.b16 %v701, %v699
    %v734 = vpack.c.b16 %v702, %v700
    %767 = vmatprep.subr.bf16.mxu0 %v704
    %768 = vmatpush1.bf16.msra.mxu0 %v703
    %769 = vmatprep.subr.bf16.mxu0 %v706
    %770 = vmatpush1.bf16.msra.mxu0 %v705
    %771 = vmatprep.subr.bf16.mxu0 %v708
    %772 = vmatpush1.bf16.msra.mxu0 %v707
    %773 = vmatprep.subr.bf16.mxu0 %v710
    %774 = vmatpush1.bf16.msra.mxu0 %v709
    %775 = vmatprep.subr.bf16.mxu0 %v712
    %776 = vmatpush1.bf16.msra.mxu0 %v711
    %777 = vmatprep.subr.bf16.mxu0 %v714
    %778 = vmatpush1.bf16.msra.mxu0 %v713
    %779 = vmatprep.subr.bf16.mxu0 %v716
    %780 = vmatpush1.bf16.msra.mxu0 %v715
    %781 = vmatprep.subr.bf16.mxu0 %v718
    %782 = vmatpush1.bf16.msra.mxu0 %v717
    %783 = vmatprep.subr.bf16.mxu0 %v720
    %784 = vmatpush1.bf16.msra.mxu0 %v719
    %785 = vmatprep.subr.bf16.mxu0 %v722
    %786 = vmatpush1.bf16.msra.mxu0 %v721
    %787 = vmatprep.subr.bf16.mxu0 %v724
    %788 = vmatpush1.bf16.msra.mxu0 %v723
    %789 = vmatprep.subr.bf16.mxu0 %v726
    %790 = vmatpush1.bf16.msra.mxu0 %v725
    %791 = vmatprep.subr.bf16.mxu0 %v728
    %792 = vmatpush1.bf16.msra.mxu0 %v727
    %793 = vmatprep.subr.bf16.mxu0 %v730
    %794 = vmatpush1.bf16.msra.mxu0 %v729
    %795 = vmatprep.subr.bf16.mxu0 %v732
    %796 = vmatpush1.bf16.msra.mxu0 %v731
    %797 = vmatprep.subr.bf16.mxu0 %v734
    %798 = vmatpush1.bf16.msra.mxu0 %v733
    %799 = vmatprep.mubr.bf16.mxu0 %v562
    %800 = vmatmul.mubr.bf16.gmra.mrb[0].mxu0 %v561
    %v801 = vpop.f32.mrb[0].mxu0
    %v802 = vadd.f32 %v600, %v801
    %v803 = vpop.f32.mrb[0].mxu0
    %v804 = vadd.f32 %v604, %v803
    %v805 = vpop.f32.mrb[0].mxu0
    %v806 = vadd.f32 %v600, %v805
    %v807 = vpop.f32.mrb[0].mxu0
    %v808 = vadd.f32 %v604, %v807
    %809 = vdwg.mxu0
    %vm810 = vcmp.gt.f32.partialorder %v802, 0.0
    %vm811 = vcmp.gt.f32.partialorder %v804, 0.0
    %vm812 = vcmp.gt.f32.partialorder %v806, 0.0
    %vm813 = vcmp.gt.f32.partialorder %v808, 0.0
    %v814 = vmul.f32 %v802, 1.442695
    %v815 = vpow.pop %v814
    %v816 = vmul.f32 %v804, 1.442695
    %v817 = vpow.pop %v816
    %v818 = vmul.f32 %v806, 1.442695
    %v819 = vpow.pop %v818
    %v820 = vmul.f32 %v808, 1.442695
    %v821 = vpow.pop %v820
    %v822 = vsub.f32 %v815, 1.0
    %v823 = vsub.f32 %v817, 1.0
    %v824 = vsub.f32 %v819, 1.0
    %v825 = vsub.f32 %v821, 1.0
    %v826 = vsel %vm810, %v802, %v822
    %v827 = vsel %vm811, %v804, %v823
    %v828 = vsel %vm812, %v806, %v824
    %v829 = vsel %vm813, %v808, %v825
    %v830 = vpack.c.bf16 %v828, %v826
    %v831 = vpack.c.bf16 %v829, %v827
    %v832 = vld [vmem:[#allocation9] sm:$0xf]
    %v833 = vld [vmem:[#allocation9 + $0x4] sm:$0xf]
    %v834 = vld [vmem:[#allocation9 + $0x8] sm:$0xf]
    %v835 = vld [vmem:[#allocation9 + $0xc] sm:$0xf]
    %v836 = vld [vmem:[#allocation9 + $0x10] sm:$0xf]
    %v837 = vld [vmem:[#allocation9 + $0x14] sm:$0xf]
    %v838 = vld [vmem:[#allocation9 + $0x18] sm:$0xf]
    %v839 = vld [vmem:[#allocation9 + $0x1c] sm:$0xf]
    %v840 = vld [vmem:[#allocation9 + $0x20] sm:$0xf]
    %v841 = vld [vmem:[#allocation9 + $0x24] sm:$0xf]
    %v842 = vld [vmem:[#allocation9 + $0x28] sm:$0xf]
    %v843 = vld [vmem:[#allocation9 + $0x2c] sm:$0xf]
    %v844 = vld [vmem:[#allocation9 + $0x30] sm:$0xf]
    %v845 = vld [vmem:[#allocation9 + $0x34] sm:$0xf]
    %v846 = vld [vmem:[#allocation9 + $0x38] sm:$0xf]
    %v847 = vld [vmem:[#allocation9 + $0x3c] sm:$0xf]
    %v848 = vld [vmem:[#allocation9 + $0x40] sm:$0xf]
    %v849 = vld [vmem:[#allocation9 + $0x44] sm:$0xf]
    %v850 = vld [vmem:[#allocation9 + $0x48] sm:$0xf]
    %v851 = vld [vmem:[#allocation9 + $0x4c] sm:$0xf]
    %v852 = vld [vmem:[#allocation9 + $0x50] sm:$0xf]
    %v853 = vld [vmem:[#allocation9 + $0x54] sm:$0xf]
    %v854 = vld [vmem:[#allocation9 + $0x58] sm:$0xf]
    %v855 = vld [vmem:[#allocation9 + $0x5c] sm:$0xf]
    %v856 = vld [vmem:[#allocation9 + $0x60] sm:$0xf]
    %v857 = vld [vmem:[#allocation9 + $0x64] sm:$0xf]
    %v858 = vld [vmem:[#allocation9 + $0x68] sm:$0xf]
    %v859 = vld [vmem:[#allocation9 + $0x6c] sm:$0xf]
    %v860 = vld [vmem:[#allocation9 + $0x70] sm:$0xf]
    %v861 = vld [vmem:[#allocation9 + $0x74] sm:$0xf]
    %v862 = vld [vmem:[#allocation9 + $0x78] sm:$0xf]
    %v863 = vld [vmem:[#allocation9 + $0x7c] sm:$0xf]
    %v864 = vld [vmem:[%s7] sm:$0x1]
    %v866 = vlaneseq
    %v867 = vshrl.u32 %v866, 7
    %v868 = vsub.s32 0, %v867
    %v869 = vrot.slane %v864, %v868
    %v903 = vunpack.c.l.b16 %v832
    %v904 = vunpack.c.l.b16 %v833
    %v905 = vunpack.c.l.b16 %v834
    %v906 = vunpack.c.l.b16 %v835
    %v907 = vunpack.c.l.b16 %v836
    %v908 = vunpack.c.l.b16 %v837
    %v909 = vunpack.c.l.b16 %v838
    %v910 = vunpack.c.l.b16 %v839
    %v911 = vunpack.c.l.b16 %v840
    %v912 = vunpack.c.l.b16 %v841
    %v913 = vunpack.c.l.b16 %v842
    %v914 = vunpack.c.l.b16 %v843
    %v915 = vunpack.c.l.b16 %v844
    %v916 = vunpack.c.l.b16 %v845
    %v917 = vunpack.c.l.b16 %v846
    %v918 = vunpack.c.l.b16 %v847
    %v919 = vunpack.c.l.b16 %v848
    %v920 = vunpack.c.l.b16 %v849
    %v921 = vunpack.c.l.b16 %v850
    %v922 = vunpack.c.l.b16 %v851
    %v923 = vunpack.c.l.b16 %v852
    %v924 = vunpack.c.l.b16 %v853
    %v925 = vunpack.c.l.b16 %v854
    %v926 = vunpack.c.l.b16 %v855
    %v927 = vunpack.c.l.b16 %v856
    %v928 = vunpack.c.l.b16 %v857
    %v929 = vunpack.c.l.b16 %v858
    %v930 = vunpack.c.l.b16 %v859
    %v931 = vunpack.c.l.b16 %v860
    %v932 = vunpack.c.l.b16 %v861
    %v933 = vunpack.c.l.b16 %v862
    %v934 = vunpack.c.l.b16 %v863
    %v935 = vpack.c.b16 %v904, %v903
    %v936 = vpack.c.b16 %v906, %v905
    %v937 = vpack.c.b16 %v908, %v907
    %v938 = vpack.c.b16 %v910, %v909
    %v939 = vpack.c.b16 %v912, %v911
    %v940 = vpack.c.b16 %v914, %v913
    %v941 = vpack.c.b16 %v916, %v915
    %v942 = vpack.c.b16 %v918, %v917
    %v943 = vpack.c.b16 %v920, %v919
    %v944 = vpack.c.b16 %v922, %v921
    %v945 = vpack.c.b16 %v924, %v923
    %v946 = vpack.c.b16 %v926, %v925
    %v947 = vpack.c.b16 %v928, %v927
    %v948 = vpack.c.b16 %v930, %v929
    %v949 = vpack.c.b16 %v932, %v931
    %v950 = vpack.c.b16 %v934, %v933
    %967 = vmatprep.subr.bf16.mxu0 0
    %968 = vmatpush1.bf16.msra.mxu0 %v935
    %969 = vmatprep.subr.bf16.mxu0 0
    %970 = vmatpush1.bf16.msra.mxu0 %v936
    %971 = vmatprep.subr.bf16.mxu0 0
    %972 = vmatpush1.bf16.msra.mxu0 %v937
    %973 = vmatprep.subr.bf16.mxu0 0
    %974 = vmatpush1.bf16.msra.mxu0 %v938
    %975 = vmatprep.subr.bf16.mxu0 0
    %976 = vmatpush1.bf16.msra.mxu0 %v939
    %977 = vmatprep.subr.bf16.mxu0 0
    %978 = vmatpush1.bf16.msra.mxu0 %v940
    %979 = vmatprep.subr.bf16.mxu0 0
    %980 = vmatpush1.bf16.msra.mxu0 %v941
    %981 = vmatprep.subr.bf16.mxu0 0
    %982 = vmatpush1.bf16.msra.mxu0 %v942
    %983 = vmatprep.subr.bf16.mxu0 0
    %984 = vmatpush1.bf16.msra.mxu0 %v943
    %985 = vmatprep.subr.bf16.mxu0 0
    %986 = vmatpush1.bf16.msra.mxu0 %v944
    %987 = vmatprep.subr.bf16.mxu0 0
    %988 = vmatpush1.bf16.msra.mxu0 %v945
    %989 = vmatprep.subr.bf16.mxu0 0
    %990 = vmatpush1.bf16.msra.mxu0 %v946
    %991 = vmatprep.subr.bf16.mxu0 0
    %992 = vmatpush1.bf16.msra.mxu0 %v947
    %993 = vmatprep.subr.bf16.mxu0 0
    %994 = vmatpush1.bf16.msra.mxu0 %v948
    %995 = vmatprep.subr.bf16.mxu0 0
    %996 = vmatpush1.bf16.msra.mxu0 %v949
    %997 = vmatprep.subr.bf16.mxu0 0
    %998 = vmatpush1.bf16.msra.mxu0 %v950
    %999 = vmatprep.mubr.bf16.mxu0 %v831
    %1000 = vmatmul.mubr.bf16.gmra.mrb[0].mxu0 %v830
    %v1001 = vpop.f32.mrb[0].mxu0
    %v1002 = vadd.f32 %v869, %v1001
    %v1003 = vpop.f32.mrb[0].mxu0
    %v1004 = vpop.f32.mrb[0].mxu0
    %v1005 = vadd.f32 %v869, %v1004
    %v1006 = vpop.f32.mrb[0].mxu0
    %1007 = vdwg.mxu0
    %v1008 = vtanh.pop %v1002
    %v1009 = vtanh.pop %v1005
    %1010 = vst [vmem:[#allocation12] sm:$0xff] %v1008
    %1011 = vst [vmem:[#allocation12 + $0x8] sm:$0xff] %v1009
    // Predicated region
    $region58: #{tpu_custom_call.1} parent=1 // pred_check
      _
    $region59: #{tpu_custom_call.1} parent=1 // pred_check_branch
      %1013 = sbr.rel (0) target = $region61
    $region60: #{tpu_custom_call.1} parent=1 // pred_region
      %s1015 = ssub.s32 256, 256
      %1016 = vsyncadd [#allocation5], %s1015
      %s1017 = sshll.u32 [#allocation12], 4
      %s1018 = int_to_ptr.vmem [resolvable:$true] %s1017
      %1023 = dma.vmem_to_hbm [thread:$0]  %s1018, 256, %s9, [#allocation5], 128, 128, 8
    $region61: #{tpu_custom_call.1} parent=1 // pred_fallthru
      _
    // Predicated region
    $region62: #{tpu_custom_call.1} parent=1 // pred_check
      _
    $region63: #{tpu_custom_call.1} parent=1 // pred_check_branch
      %1025 = sbr.rel (0) target = $region65
    $region64: #{tpu_custom_call.1} parent=1 // pred_region
      %1026 = dma.done [#allocation5], 256
    $region65: #{tpu_custom_call.1} parent=1 // pred_fallthru
      _
    %1027 = vsyncpa [#allocation4], 1
    %1028 = vsyncpa [#allocation7], 1
    %1029 = vsyncpa [#allocation10], 1
    %1030 = vsyncpa [#allocation5], 1

</llo_original>
